<compile_context>
chip_gen: v5e
topology: v5e:2x2
jax: 0.10.0
libtpu: 0.0.40
codegen_flags: <defaults>
</compile_context>

<pallas_src>
import jax
import jax.numpy as jnp
from jax.experimental import pallas as pl
from jax.experimental.pallas import tpu as pltpu


_LANES = 512            # lane-dense width (multiple of 128)
_MAX_BLOCK_ROWS = 2048  # sublane tile -> 2048 * 512 * 4 B = 4 MiB f32 block


def _sigmoid_kernel(x_ref, o_ref):
    # Elementwise hot path on one (block_rows, _LANES) VMEM tile.
    x = x_ref[...].astype(jnp.float32)
    # sigmoid(x) = 0.5 * (tanh(x/2) + 1)  -- exact, single EUP op (tanh).
    o_ref[...] = (0.5 * (jnp.tanh(0.5 * x) + 1.0)).astype(o_ref.dtype)


def learnable_graph_forward(A):
    """Pallas equivalent of LearnableGraph.forward(): sigmoid(A).

    A: (1, node_num, node_num) float32
    returns: (1, node_num, node_num) float32
    """
    orig_shape = A.shape
    orig_dtype = A.dtype
    total = A.size

    # --- Build a lane-dense 2D slab: flatten, pad to a multiple of _LANES. ---
    lanes = _LANES
    flat = A.reshape(-1)
    rows = pl.cdiv(total, lanes)

    # Pick the row tile: big blocks for pipelining, full-dim block when small.
    if rows > _MAX_BLOCK_ROWS:
        block_rows = _MAX_BLOCK_ROWS
        padded_rows = pl.cdiv(rows, block_rows) * block_rows
    else:
        block_rows = rows          # block == full row extent (no (8,) constraint)
        padded_rows = rows

    padded_len = padded_rows * lanes
    if padded_len != total:
        flat = jnp.pad(flat, (0, padded_len - total))
    slab = flat.reshape(padded_rows, lanes)

    grid = (padded_rows // block_rows,)

    out = pl.pallas_call(
        _sigmoid_kernel,
        out_shape=jax.ShapeDtypeStruct(slab.shape, orig_dtype),
        grid_spec=pl.GridSpec(
            grid=grid,
            in_specs=[pl.BlockSpec((block_rows, lanes), lambda i: (i, 0))],
            out_specs=pl.BlockSpec((block_rows, lanes), lambda i: (i, 0)),
        ),
        compiler_params=pltpu.CompilerParams(
            dimension_semantics=("parallel",),
            vmem_limit_bytes=32 * 1024 * 1024,
        ),
    )(slab)

    return out.reshape(-1)[:total].reshape(orig_shape)


if __name__ == "__main__":
    key = jax.random.PRNGKey(0)

    # Primary case: small node_num consistent with the module's hyperparameter.
    node_num = 16
    k0, k1 = jax.random.split(key)
    A = jax.random.normal(k0, (1, node_num, node_num), dtype=jnp.float32)
    out = jax.block_until_ready(learnable_graph_forward(A))
    ref = jax.nn.sigmoid(A)
    assert out.shape == (1, node_num, node_num)
    assert jnp.max(jnp.abs(out - ref)) < 1e-5

    # Secondary case: exercises the padding path (20*20 = 400 -> padded to 512).
    node_num2 = 20
    A2 = jax.random.normal(k1, (1, node_num2, node_num2), dtype=jnp.float32)
    out2 = jax.block_until_ready(learnable_graph_forward(A2))
    ref2 = jax.nn.sigmoid(A2)
    assert out2.shape == (1, node_num2, node_num2)
    assert jnp.max(jnp.abs(out2 - ref2)) < 1e-5

    print("KERNEL_OK")
</pallas_src>

<mosaic_0001>
module attributes {stable_mosaic.version = 11 : i64} {
  func.func @_sigmoid_kernel(%arg0: i32, %arg1: memref<1x512xf32, #tpu.memory_space<vmem>>, %arg2: memref<1x512xf32, #tpu.memory_space<vmem>>) attributes {dimension_semantics = [#tpu.dimension_semantics<parallel>], iteration_bounds = array<i64: 1>, scalar_prefetch = 0 : i64, scratch_operands = 0 : i64, tpu.core_type = #tpu.core_type<tc>, window_params = [{transform_indices = @transform_0, window_bounds = array<i64: 1, 512>}, {transform_indices = @transform_1, window_bounds = array<i64: 1, 512>}]} {
    %c0 = arith.constant 0 : index
    %c0_0 = arith.constant 0 : index
    %0 = vector.load %arg1[%c0, %c0_0] : memref<1x512xf32, #tpu.memory_space<vmem>>, vector<1x512xf32>
    %cst = arith.constant 5.000000e-01 : f32
    %1 = vector.broadcast %cst : f32 to vector<1x512xf32>
    %2 = arith.mulf %1, %0 : vector<1x512xf32>
    %3 = math.tanh %2 : vector<1x512xf32>
    %cst_1 = arith.constant 1.000000e+00 : f32
    %4 = vector.broadcast %cst_1 : f32 to vector<1x512xf32>
    %5 = arith.addf %3, %4 : vector<1x512xf32>
    %cst_2 = arith.constant 5.000000e-01 : f32
    %6 = vector.broadcast %cst_2 : f32 to vector<1x512xf32>
    %7 = arith.mulf %6, %5 : vector<1x512xf32>
    %c0_3 = arith.constant 0 : index
    %c0_4 = arith.constant 0 : index
    %8 = vector.load %arg2[%c0_3, %c0_4] : memref<1x512xf32, #tpu.memory_space<vmem>>, vector<1x512xf32>
    tpu.vector_store %arg2[%c0_3, %c0_4], %7 {strides = array<i32>} : memref<1x512xf32, #tpu.memory_space<vmem>>, vector<1x512xf32>,
    return
  }
  func.func @transform_0(%arg0: i32) -> (i32, i32) {
    %c0_i32 = arith.constant 0 : i32
    %c0_i32_0 = arith.constant 0 : i32
    return %arg0, %c0_i32 : i32, i32
  }
  func.func @transform_1(%arg0: i32) -> (i32, i32) {
    %c0_i32 = arith.constant 0 : i32
    %c0_i32_0 = arith.constant 0 : i32
    return %arg0, %c0_i32 : i32, i32
  }
}

</mosaic_0001>

<llo_original>
// kernel: tpu_custom_call.1
$region0: #{tpu_custom_call.1}
  #allocation0 [shape = 'u32[]', space=smem, size = 0x4, offset = 0x4, fixed_abs, tag = 'smem constant byte address 0x4 - core index']
  #allocation1 [shape = 'u32[72,128]{1,0:T(1,128)}', space=vmem, size = 0x9000, scoped, tag = 'internal scratch']
  %s0 = inlined_call_operand.hbm [shape: f32[1,512], index: 0, kind: input, shape index: {}]
  %s1 = inlined_call_operand.hbm [shape: f32[1,512], index: 1, kind: output, shape index: {}]
  %s2 = sld [smem:[#allocation0]]
  $region18: #{tpu_custom_call.1} parent=0
    _
  %s4 = ssub.s32 1, %s2
  %s5 = scalar_select 0, %s4, %s2
  $region1: #{tpu_custom_call.1} parent=0
    #allocation2 [shape = 'u8[2048]{0}', space=vmem, size = 0x800, scoped, tag = 'input window, operand 0, single buffered']
    #allocation3 [shape = 's32[1]{0}', space=sflag, size = 0x4, scoped, tag = 'scoped memory for tpu_custom_call.1']
    #allocation4 [shape = 's32[1]{0}', space=sflag, size = 0x4, scoped, tag = 'scoped memory for tpu_custom_call.1']
    #allocation5 [shape = 'u8[2048]{0}', space=vmem, size = 0x800, scoped, tag = 'output window, operand 0, single buffered']
    %6 = vsyncpa [#allocation3], 0
    %7 = vsyncpa [#allocation4], 0
    // Predicated region
    $region2: #{tpu_custom_call.1} parent=1 // pred_check
      _
    $region3: #{tpu_custom_call.1} parent=1 // pred_check_branch
      %9 = sbr.rel (0) target = $region5
    $region4: #{tpu_custom_call.1} parent=1 // pred_region
      %11 = vsyncadd [#allocation3], 0
      %s13 = sshll.u32 %s0, 4
      %s14 = int_to_ptr.hbm [resolvable:$true] %s13
      %s15 = sshll.u32 [#allocation2], 4
      %s16 = int_to_ptr.vmem [resolvable:$true] %s15
      %18 = dma.hbm_to_vmem [thread:$0]  %s14, 64, %s16, [#allocation3]
    $region5: #{tpu_custom_call.1} parent=1 // pred_fallthru
      _
    // Predicated region
    $region6: #{tpu_custom_call.1} parent=1 // pred_check
      _
    $region7: #{tpu_custom_call.1} parent=1 // pred_check_branch
      %20 = sbr.rel (0) target = $region9
    $region8: #{tpu_custom_call.1} parent=1 // pred_region
      %22 = dma.done [#allocation3], 64
    $region9: #{tpu_custom_call.1} parent=1 // pred_fallthru
      _
    %v23 = vld [vmem:[#allocation2] sm:$0xf]
    %v24 = vmul.f32 %v23, 0.5
    %v25 = vtanh.pop %v24
    %v26 = vadd.f32 %v25, 1.0
    %v27 = vmul.f32 %v26, 0.5
    %v28 = vlaneseq
    %vm29 = vcmp.ge.s32.totalorder %v28, 0
    %vm30 = vcmp.lt.s32.totalorder %v28, 512
    %vm31 = vmand %vm29, %vm30
    %32 = vst.msk [vmem:[#allocation5] sm:$0xf] %vm31, %v27
    // Predicated region
    $region10: #{tpu_custom_call.1} parent=1 // pred_check
      _
    $region11: #{tpu_custom_call.1} parent=1 // pred_check_branch
      %34 = sbr.rel (0) target = $region13
    $region12: #{tpu_custom_call.1} parent=1 // pred_region
      %36 = vsyncadd [#allocation4], 0
      %s38 = sshll.u32 [#allocation5], 4
      %s39 = int_to_ptr.vmem [resolvable:$true] %s38
      %s40 = sshll.u32 %s1, 4
      %s41 = int_to_ptr.hbm [resolvable:$true] %s40
      %43 = dma.vmem_to_hbm [thread:$0]  %s39, 64, %s41, [#allocation4]
    $region13: #{tpu_custom_call.1} parent=1 // pred_fallthru
      _
    // Predicated region
    $region14: #{tpu_custom_call.1} parent=1 // pred_check
      _
    $region15: #{tpu_custom_call.1} parent=1 // pred_check_branch
      %45 = sbr.rel (0) target = $region17
    $region16: #{tpu_custom_call.1} parent=1 // pred_region
      %47 = dma.done [#allocation4], 64
    $region17: #{tpu_custom_call.1} parent=1 // pred_fallthru
      _
    %48 = vsyncpa [#allocation3], 1
    %49 = vsyncpa [#allocation4], 1

</llo_original>
